<compile_context>
chip_gen: v6e
topology: v6e:2x2x1
jax: 0.10.0
libtpu: 0.0.40
codegen_flags: <defaults>
</compile_context>

<pallas_src>
import functools

import jax
import jax.numpy as jnp
from jax.experimental import pallas as pl
from jax.experimental.pallas import tpu as pltpu

_LANE = 128  # vreg lane width


def actor_critic_kernel(x_ref, w1_ref, b1_ref, w2_ref, b2_ref, out_ref, *,
                        action_dim):
    x = x_ref[...]                                          # (TB, state_dim)

    # ---- fused layer 1: [actor | critic] hidden in one 128-lane matmul ----
    h = jnp.tanh(
        jnp.dot(x, w1_ref[...], preferred_element_type=jnp.float32)
        + b1_ref[...]                                       # (1, 128) row bias
    )                                                       # (TB, 128)

    # ---- fused layer 2: block-diagonal weight ----
    # lanes [0, action_dim) = actor logits, lane action_dim = value, rest = 0.
    pre = (
        jnp.dot(h, w2_ref[...], preferred_element_type=jnp.float32)
        + b2_ref[...]
    )                                                       # (TB, 128)

    lane = jax.lax.broadcasted_iota(jnp.int32, pre.shape, dimension=1)
    is_logit = lane < action_dim

    # Masked softmax over the logit lanes only (stays lane-dense, no reshapes).
    logits = jnp.where(is_logit, pre, jnp.float32(-1e30))
    m = jnp.max(logits, axis=-1, keepdims=True)
    e = jnp.exp(logits - m)                                 # 0 on masked lanes
    denom = jnp.sum(e, axis=-1, keepdims=True)
    probs = e * pl.reciprocal(denom, approx=False)          # keep 1e-5 accuracy

    # Single unmasked 128-wide store: probs | value | zeros.
    out_ref[...] = jnp.where(is_logit, probs, pre)


def pack_params(params):
    """Fuse actor/critic weights into lane-dense layer-1 / layer-2 operands."""
    state_dim, hidden = params["wa1"].shape
    action_dim = params["wa2"].shape[1]
    assert 2 * hidden <= _LANE, "fused hidden width must fit in 128 lanes"
    assert action_dim + 1 <= _LANE, "fused head width must fit in 128 lanes"

    # Layer 1: (state_dim, 128) = [wa1 | wc1 | 0-pad]
    w1 = jnp.zeros((state_dim, _LANE), jnp.float32)
    w1 = w1.at[:, :hidden].set(params["wa1"])
    w1 = w1.at[:, hidden:2 * hidden].set(params["wc1"])
    b1 = jnp.zeros((1, _LANE), jnp.float32)
    b1 = b1.at[0, :hidden].set(params["ba1"])
    b1 = b1.at[0, hidden:2 * hidden].set(params["bc1"])

    # Layer 2: block-diagonal (128, 128)
    w2 = jnp.zeros((_LANE, _LANE), jnp.float32)
    w2 = w2.at[:hidden, :action_dim].set(params["wa2"])
    w2 = w2.at[hidden:2 * hidden, action_dim].set(params["wc2"][:, 0])
    b2 = jnp.zeros((1, _LANE), jnp.float32)
    b2 = b2.at[0, :action_dim].set(params["ba2"])
    b2 = b2.at[0, action_dim].set(params["bc2"][0])

    return w1, b1, w2, b2, action_dim


def actor_critic_forward(state, params, *, block_b=512):
    """state: (B, state_dim) float32. Returns (probs (B, A), value (B, 1))."""
    B, state_dim = state.shape
    w1, b1, w2, b2, action_dim = pack_params(params)

    # Batch tile: multiple of 8 sublanes, capped so VMEM stays small even on
    # v7x's 32 MiB scoped default (weights are <0.1 MiB, tiles a few 100 KiB).
    tb = min(block_b, max(8, B))
    tb = ((tb + 7) // 8) * 8
    b_pad = ((B + tb - 1) // tb) * tb
    x = state if b_pad == B else jnp.pad(state, ((0, b_pad - B), (0, 0)))

    kernel = functools.partial(actor_critic_kernel, action_dim=action_dim)
    fused = pl.pallas_call(
        kernel,
        out_shape=jax.ShapeDtypeStruct((b_pad, _LANE), jnp.float32),
        grid_spec=pltpu.PrefetchScalarGridSpec(
            num_scalar_prefetch=0,
            grid=(b_pad // tb,),
            in_specs=[
                pl.BlockSpec((tb, state_dim), lambda i: (i, 0)),   # state tile
                pl.BlockSpec((state_dim, _LANE), lambda i: (0, 0)),  # W1
                pl.BlockSpec((1, _LANE), lambda i: (0, 0)),          # b1
                pl.BlockSpec((_LANE, _LANE), lambda i: (0, 0)),      # W2
                pl.BlockSpec((1, _LANE), lambda i: (0, 0)),          # b2
            ],
            out_specs=pl.BlockSpec((tb, _LANE), lambda i: (i, 0)),
        ),
        compiler_params=pltpu.CompilerParams(
            dimension_semantics=("parallel",),   # shard batch tiles across TCs
        ),
    )(x, w1, b1, w2, b2)

    probs = fused[:B, :action_dim]
    value = fused[:B, action_dim:action_dim + 1]
    return probs, value


def init_params(key, state_dim, action_dim, hidden=64):
    """Deterministic PyTorch-like init: U(-1/sqrt(fan_in), 1/sqrt(fan_in))."""
    def linear(key, fan_in, fan_out):
        kw, kb = jax.random.split(key)
        bound = 1.0 / jnp.sqrt(fan_in)
        w = jax.random.uniform(kw, (fan_in, fan_out), jnp.float32, -bound, bound)
        b = jax.random.uniform(kb, (fan_out,), jnp.float32, -bound, bound)
        return w, b

    k1, k2, k3, k4 = jax.random.split(key, 4)
    wa1, ba1 = linear(k1, state_dim, hidden)
    wa2, ba2 = linear(k2, hidden, action_dim)
    wc1, bc1 = linear(k3, state_dim, hidden)
    wc2, bc2 = linear(k4, hidden, 1)
    return dict(wa1=wa1, ba1=ba1, wa2=wa2, ba2=ba2,
                wc1=wc1, bc1=bc1, wc2=wc2, bc2=bc2)


def actor_critic_ref(state, p):
    """Pure-JAX reference for correctness check."""
    h_a = jnp.tanh(state @ p["wa1"] + p["ba1"])
    logits = h_a @ p["wa2"] + p["ba2"]
    probs = jax.nn.softmax(logits, axis=-1)
    h_c = jnp.tanh(state @ p["wc1"] + p["bc1"])
    value = h_c @ p["wc2"] + p["bc2"]
    return probs, value


if __name__ == "__main__":
    B, state_dim, action_dim = 8, 32, 16

    key = jax.random.PRNGKey(0)
    k_state, k_params = jax.random.split(key)
    state = jax.random.normal(k_state, (B, state_dim), dtype=jnp.float32)
    params = init_params(k_params, state_dim, action_dim)

    probs, value = actor_critic_forward(state, params)
    probs, value = jax.block_until_ready((probs, value))

    # sanity check against pure-JAX reference
    probs_ref, value_ref = actor_critic_ref(state, params)
    assert probs.shape == (B, action_dim)
    assert value.shape == (B, 1)
    assert jnp.allclose(probs, probs_ref, atol=1e-5, rtol=1e-5)
    assert jnp.allclose(value, value_ref, atol=1e-5, rtol=1e-5)
    assert jnp.allclose(jnp.sum(probs, axis=-1), 1.0, atol=1e-5)

    print("KERNEL_OK")
</pallas_src>

<mosaic_0001>
module attributes {stable_mosaic.version = 11 : i64} {
  func.func @actor_critic_kernel(%arg0: i32, %arg1: memref<8x32xf32, #tpu.memory_space<vmem>>, %arg2: memref<32x128xf32, #tpu.memory_space<vmem>>, %arg3: memref<1x128xf32, #tpu.memory_space<vmem>>, %arg4: memref<128x128xf32, #tpu.memory_space<vmem>>, %arg5: memref<1x128xf32, #tpu.memory_space<vmem>>, %arg6: memref<8x128xf32, #tpu.memory_space<vmem>>) attributes {dimension_semantics = [#tpu.dimension_semantics<parallel>], iteration_bounds = array<i64: 1>, scalar_prefetch = 0 : i64, scratch_operands = 0 : i64, tpu.core_type = #tpu.core_type<tc>, window_params = [{transform_indices = @transform_0, window_bounds = array<i64: 8, 32>}, {pipeline_mode = #tpu.pipeline_mode<synchronous>, transform_indices = @transform_1, window_bounds = array<i64: 32, 128>}, {pipeline_mode = #tpu.pipeline_mode<synchronous>, transform_indices = @transform_2, window_bounds = array<i64: 1, 128>}, {pipeline_mode = #tpu.pipeline_mode<synchronous>, transform_indices = @transform_3, window_bounds = array<i64: 128, 128>}, {pipeline_mode = #tpu.pipeline_mode<synchronous>, transform_indices = @transform_4, window_bounds = array<i64: 1, 128>}, {transform_indices = @transform_5, window_bounds = array<i64: 8, 128>}]} {
    %c0 = arith.constant 0 : index
    %c0_0 = arith.constant 0 : index
    %0 = vector.load %arg1[%c0, %c0_0] : memref<8x32xf32, #tpu.memory_space<vmem>>, vector<8x32xf32>
    %c0_1 = arith.constant 0 : index
    %c0_2 = arith.constant 0 : index
    %1 = vector.load %arg2[%c0_1, %c0_2] : memref<32x128xf32, #tpu.memory_space<vmem>>, vector<32x128xf32>
    %cst = arith.constant dense<0.000000e+00> : vector<8x128xf32>
    %2 = tpu.matmul %0, %1, %cst {dimension_numbers = #tpu.dot_dimension_numbers<[1], [0], [0], [1], [0, 0, 1, 1], [], []>} : vector<8x32xf32>, vector<32x128xf32>, vector<8x128xf32> -> vector<8x128xf32>
    %c0_3 = arith.constant 0 : index
    %c0_4 = arith.constant 0 : index
    %3 = vector.load %arg3[%c0_3, %c0_4] : memref<1x128xf32, #tpu.memory_space<vmem>>, vector<1x128xf32>
    %4 = vector.broadcast %3 : vector<1x128xf32> to vector<8x128xf32>
    %5 = arith.addf %2, %4 : vector<8x128xf32>
    %6 = math.tanh %5 : vector<8x128xf32>
    %c0_5 = arith.constant 0 : index
    %c0_6 = arith.constant 0 : index
    %7 = vector.load %arg4[%c0_5, %c0_6] : memref<128x128xf32, #tpu.memory_space<vmem>>, vector<128x128xf32>
    %cst_7 = arith.constant dense<0.000000e+00> : vector<8x128xf32>
    %8 = tpu.matmul %6, %7, %cst_7 {dimension_numbers = #tpu.dot_dimension_numbers<[1], [0], [0], [1], [0, 0, 1, 1], [], []>} : vector<8x128xf32>, vector<128x128xf32>, vector<8x128xf32> -> vector<8x128xf32>
    %c0_8 = arith.constant 0 : index
    %c0_9 = arith.constant 0 : index
    %9 = vector.load %arg5[%c0_8, %c0_9] : memref<1x128xf32, #tpu.memory_space<vmem>>, vector<1x128xf32>
    %10 = vector.broadcast %9 : vector<1x128xf32> to vector<8x128xf32>
    %11 = arith.addf %8, %10 : vector<8x128xf32>
    %12 = tpu.iota {dimensions = array<i32: 1>} : vector<8x128xi32>
    %c16_i32 = arith.constant 16 : i32
    %13 = vector.broadcast %c16_i32 : i32 to vector<8x128xi32>
    %14 = arith.cmpi slt, %12, %13 : vector<8x128xi32>
    %cst_10 = arith.constant -1.000000e+30 : f32
    %15 = vector.broadcast %cst_10 : f32 to vector<8x128xf32>
    %16 = arith.select %14, %11, %15 : vector<8x128xi1>, vector<8x128xf32>
    %cst_11 = arith.constant dense<0xFF800000> : vector<8xf32>
    %17 = vector.multi_reduction <maximumf>, %16, %cst_11 [1] : vector<8x128xf32> to vector<8xf32>
    %18 = vector.shape_cast %17 : vector<8xf32> to vector<8x1xf32>
    %19 = vector.broadcast %18 : vector<8x1xf32> to vector<8x128xf32>
    %20 = arith.subf %16, %19 : vector<8x128xf32>
    %21 = math.exp %20 : vector<8x128xf32>
    %cst_12 = arith.constant dense<0.000000e+00> : vector<8xf32>
    %22 = vector.multi_reduction <add>, %21, %cst_12 [1] : vector<8x128xf32> to vector<8xf32>
    %23 = vector.shape_cast %22 : vector<8xf32> to vector<8x1xf32>
    %24 = tpu.reciprocal %23 : vector<8x1xf32> -> vector<8x1xf32>
    %25 = vector.broadcast %24 : vector<8x1xf32> to vector<8x128xf32>
    %26 = arith.mulf %21, %25 : vector<8x128xf32>
    %27 = arith.select %14, %26, %11 : vector<8x128xi1>, vector<8x128xf32>
    %c0_13 = arith.constant 0 : index
    %c0_14 = arith.constant 0 : index
    %28 = vector.load %arg6[%c0_13, %c0_14] : memref<8x128xf32, #tpu.memory_space<vmem>>, vector<8x128xf32>
    tpu.vector_store %arg6[%c0_13, %c0_14], %27 {strides = array<i32>} : memref<8x128xf32, #tpu.memory_space<vmem>>, vector<8x128xf32>,
    return
  }
  func.func @transform_0(%arg0: i32) -> (i32, i32) {
    %c0_i32 = arith.constant 0 : i32
    %c0_i32_0 = arith.constant 0 : i32
    return %arg0, %c0_i32 : i32, i32
  }
  func.func @transform_1(%arg0: i32) -> (i32, i32) {
    %c0_i32 = arith.constant 0 : i32
    %c0_i32_0 = arith.constant 0 : i32
    %c0_i32_1 = arith.constant 0 : i32
    return %c0_i32, %c0_i32_0 : i32, i32
  }
  func.func @transform_2(%arg0: i32) -> (i32, i32) {
    %c0_i32 = arith.constant 0 : i32
    %c0_i32_0 = arith.constant 0 : i32
    %c0_i32_1 = arith.constant 0 : i32
    return %c0_i32, %c0_i32_0 : i32, i32
  }
  func.func @transform_3(%arg0: i32) -> (i32, i32) {
    %c0_i32 = arith.constant 0 : i32
    %c0_i32_0 = arith.constant 0 : i32
    %c0_i32_1 = arith.constant 0 : i32
    return %c0_i32, %c0_i32_0 : i32, i32
  }
  func.func @transform_4(%arg0: i32) -> (i32, i32) {
    %c0_i32 = arith.constant 0 : i32
    %c0_i32_0 = arith.constant 0 : i32
    %c0_i32_1 = arith.constant 0 : i32
    return %c0_i32, %c0_i32_0 : i32, i32
  }
  func.func @transform_5(%arg0: i32) -> (i32, i32) {
    %c0_i32 = arith.constant 0 : i32
    %c0_i32_0 = arith.constant 0 : i32
    return %arg0, %c0_i32 : i32, i32
  }
}

</mosaic_0001>

<llo_original>
// kernel: tpu_custom_call.1
$region0: #{tpu_custom_call.1}
  #allocation0 [shape = 'u32[]', space=smem, size = 0x4, offset = 0x4, fixed_abs, tag = 'smem constant byte address 0x4 - core index']
  #allocation1 [shape = 'u32[144,128]{1,0:T(1,128)}', space=vmem, size = 0x12000, scoped, tag = 'internal scratch']
  %s0 = inlined_call_operand.hbm [shape: f32[8,32], index: 0, kind: input, shape index: {}]
  %s1 = inlined_call_operand.hbm [shape: f32[32,128], index: 1, kind: input, shape index: {}]
  %s2 = inlined_call_operand.vmem [shape: f32[1,128], index: 2, kind: input, shape index: {}]
  %s3 = inlined_call_operand.hbm [shape: f32[128,128], index: 3, kind: input, shape index: {}]
  %s4 = inlined_call_operand.vmem [shape: f32[1,128], index: 4, kind: input, shape index: {}]
  %s5 = inlined_call_operand.hbm [shape: f32[8,128], index: 5, kind: output, shape index: {}]
  %s6 = sld [smem:[#allocation0]]
  $region42: #{tpu_custom_call.1} parent=0
    _
  %s8 = ssub.s32 1, %s6
  %s9 = scalar_select 0, %s8, %s6
  $region1: #{tpu_custom_call.1} parent=0
    #allocation2 [shape = 'u8[4096]{0}', space=vmem, size = 0x1000, scoped, tag = 'input window, operand 0, single buffered']
    #allocation3 [shape = 's32[1]{0}', space=sflag, size = 0x4, scoped, tag = 'scoped memory for tpu_custom_call.1']
    #allocation4 [shape = 's32[1]{0}', space=sflag, size = 0x4, scoped, tag = 'scoped memory for tpu_custom_call.1']
    #allocation5 [shape = 'u8[16384]{0}', space=vmem, size = 0x4000, scoped, tag = 'input window, operand 1, single buffered']
    #allocation6 [shape = 's32[1]{0}', space=sflag, size = 0x4, scoped, tag = 'scoped memory for tpu_custom_call.1']
    #allocation7 [shape = 'u8[65536]{0}', space=vmem, size = 0x10000, scoped, tag = 'input window, operand 3, single buffered']
    #allocation8 [shape = 'u8[4096]{0}', space=vmem, size = 0x1000, scoped, tag = 'output window, operand 0, single buffered']
    %10 = vsyncpa [#allocation3], 0
    %11 = vsyncpa [#allocation6], 0
    %12 = vsyncpa [#allocation4], 0
    // Predicated region
    $region2: #{tpu_custom_call.1} parent=1 // pred_check
      _
    $region3: #{tpu_custom_call.1} parent=1 // pred_check_branch
      %14 = sbr.rel (0) target = $region5
    $region4: #{tpu_custom_call.1} parent=1 // pred_region
      %s16 = ssub.s32 128, 128
      %17 = vsyncadd [#allocation3], %s16
      %s19 = sshll.u32 [#allocation2], 4
      %s20 = int_to_ptr.vmem [resolvable:$true] %s19
      %22 = dma.hbm_to_vmem [thread:$0]  %s0, 128, %s20, [#allocation3]
    $region5: #{tpu_custom_call.1} parent=1 // pred_fallthru
      _
    // Predicated region
    $region6: #{tpu_custom_call.1} parent=1 // pred_check
      _
    $region7: #{tpu_custom_call.1} parent=1 // pred_check_branch
      %24 = sbr.rel (0) target = $region9
    $region8: #{tpu_custom_call.1} parent=1 // pred_region
      %s26 = ssub.s32 512, 512
      %27 = vsyncadd [#allocation6], %s26
      %s28 = sshll.u32 [#allocation5], 4
      %s29 = int_to_ptr.vmem [resolvable:$true] %s28
      %34 = dma.hbm_to_vmem [thread:$0]  %s1, 512, %s29, [#allocation6], 128, 128, 8
    $region9: #{tpu_custom_call.1} parent=1 // pred_fallthru
      _
    // Predicated region
    $region10: #{tpu_custom_call.1} parent=1 // pred_check
      _
    $region11: #{tpu_custom_call.1} parent=1 // pred_check_branch
      %36 = sbr.rel (0) target = $region13
    $region12: #{tpu_custom_call.1} parent=1 // pred_region
      _
    $region13: #{tpu_custom_call.1} parent=1 // pred_fallthru
      _
    // Predicated region
    $region14: #{tpu_custom_call.1} parent=1 // pred_check
      _
    $region15: #{tpu_custom_call.1} parent=1 // pred_check_branch
      %38 = sbr.rel (0) target = $region17
    $region16: #{tpu_custom_call.1} parent=1 // pred_region
      %s40 = ssub.s32 2048, 2048
      %41 = vsyncadd [#allocation6], %s40
      %s42 = sshll.u32 [#allocation7], 4
      %s43 = int_to_ptr.vmem [resolvable:$true] %s42
      %48 = dma.hbm_to_vmem [thread:$0]  %s3, 2048, %s43, [#allocation6], 128, 128, 8
    $region17: #{tpu_custom_call.1} parent=1 // pred_fallthru
      _
    // Predicated region
    $region18: #{tpu_custom_call.1} parent=1 // pred_check
      _
    $region19: #{tpu_custom_call.1} parent=1 // pred_check_branch
      %50 = sbr.rel (0) target = $region21
    $region20: #{tpu_custom_call.1} parent=1 // pred_region
      _
    $region21: #{tpu_custom_call.1} parent=1 // pred_fallthru
      _
    // Predicated region
    $region22: #{tpu_custom_call.1} parent=1 // pred_check
      _
    $region23: #{tpu_custom_call.1} parent=1 // pred_check_branch
      %52 = sbr.rel (0) target = $region25
    $region24: #{tpu_custom_call.1} parent=1 // pred_region
      %53 = dma.done [#allocation3], 128
    $region25: #{tpu_custom_call.1} parent=1 // pred_fallthru
      _
    // Predicated region
    $region26: #{tpu_custom_call.1} parent=1 // pred_check
      _
    $region27: #{tpu_custom_call.1} parent=1 // pred_check_branch
      %55 = sbr.rel (0) target = $region29
    $region28: #{tpu_custom_call.1} parent=1 // pred_region
      %56 = dma.done [#allocation6], 512
    $region29: #{tpu_custom_call.1} parent=1 // pred_fallthru
      _
    // Predicated region
    $region30: #{tpu_custom_call.1} parent=1 // pred_check
      _
    $region31: #{tpu_custom_call.1} parent=1 // pred_check_branch
      %58 = sbr.rel (0) target = $region33
    $region32: #{tpu_custom_call.1} parent=1 // pred_region
      %59 = dma.done [#allocation6], 2048
    $region33: #{tpu_custom_call.1} parent=1 // pred_fallthru
      _
    %v60 = vld [vmem:[#allocation2] sm:$0xff]
    %v61 = vld [vmem:[#allocation5] sm:$0xff]
    %v62 = vld [vmem:[#allocation5 + $0x8] sm:$0xff]
    %v63 = vld [vmem:[#allocation5 + $0x10] sm:$0xff]
    %v64 = vld [vmem:[#allocation5 + $0x18] sm:$0xff]
    %v65 = vld [vmem:[%s2] sm:$0x1]
    %v67 = vlaneseq
    %v68 = vshrl.u32 %v67, 7
    %v69 = vsub.s32 0, %v68
    %v70 = vrot.slane %v65, %v69
    %vm72 = vcmask 261120
    %v74 = vsel %vm72, %v60, 0
    %76 = vmatprep.subr.mxu0 0.0
    %77 = vmatpush1.msra.mxu0 0.0
    %78 = vmatprep.subr.mxu0 0.0
    %79 = vmatpush1.msra.mxu0 0.0
    %80 = vmatprep.subr.mxu0 0.0
    %81 = vmatpush1.msra.mxu0 0.0
    %82 = vmatprep.subr.mxu0 0.0
    %83 = vmatpush1.msra.mxu0 0.0
    %84 = vmatprep.subr.mxu0 0.0
    %85 = vmatpush1.msra.mxu0 0.0
    %86 = vmatprep.subr.mxu0 0.0
    %87 = vmatpush1.msra.mxu0 0.0
    %88 = vmatprep.subr.mxu0 0.0
    %89 = vmatpush1.msra.mxu0 0.0
    %90 = vmatprep.subr.mxu0 0.0
    %91 = vmatpush1.msra.mxu0 0.0
    %92 = vmatprep.subr.mxu0 0.0
    %93 = vmatpush1.msra.mxu0 0.0
    %94 = vmatprep.subr.mxu0 0.0
    %95 = vmatpush1.msra.mxu0 0.0
    %96 = vmatprep.subr.mxu0 0.0
    %97 = vmatpush1.msra.mxu0 0.0
    %98 = vmatprep.subr.mxu0 0.0
    %99 = vmatpush1.msra.mxu0 0.0
    %100 = vmatprep.subr.mxu0 0.0
    %101 = vmatpush1.msra.mxu0 %v64
    %102 = vmatprep.subr.mxu0 0.0
    %103 = vmatpush1.msra.mxu0 %v63
    %104 = vmatprep.subr.mxu0 0.0
    %105 = vmatpush1.msra.mxu0 %v62
    %106 = vmatprep.subr.mxu0 0.0
    %107 = vmatpush1.msra.mxu0 %v61
    %108 = vmatprep.subr.mxu0 0.0
    %109 = vmatpush2.msra.mxu0 0.0
    %110 = vmatprep.subr.mxu0 0.0
    %111 = vmatpush2.msra.mxu0 0.0
    %112 = vmatprep.subr.mxu0 0.0
    %113 = vmatpush2.msra.mxu0 0.0
    %114 = vmatprep.subr.mxu0 0.0
    %115 = vmatpush2.msra.mxu0 0.0
    %116 = vmatprep.subr.mxu0 0.0
    %117 = vmatpush2.msra.mxu0 0.0
    %118 = vmatprep.subr.mxu0 0.0
    %119 = vmatpush2.msra.mxu0 0.0
    %120 = vmatprep.subr.mxu0 0.0
    %121 = vmatpush2.msra.mxu0 0.0
    %122 = vmatprep.subr.mxu0 0.0
    %123 = vmatpush2.msra.mxu0 0.0
    %124 = vmatprep.subr.mxu0 0.0
    %125 = vmatpush2.msra.mxu0 0.0
    %126 = vmatprep.subr.mxu0 0.0
    %127 = vmatpush2.msra.mxu0 0.0
    %128 = vmatprep.subr.mxu0 0.0
    %129 = vmatpush2.msra.mxu0 0.0
    %130 = vmatprep.subr.mxu0 0.0
    %131 = vmatpush2.msra.mxu0 0.0
    %132 = vmatprep.subr.mxu0 0.0
    %133 = vmatpush2.msra.mxu0 0.0
    %134 = vmatprep.subr.mxu0 0.0
    %135 = vmatpush2.msra.mxu0 0.0
    %136 = vmatprep.subr.mxu0 0.0
    %137 = vmatpush2.msra.mxu0 0.0
    %138 = vmatprep.subr.mxu0 0.0
    %139 = vmatpush2.msra.mxu0 0.0
    %140 = vmatprep.mubr.f32.mxu0 0.0
    %141 = vmatmul.mubr.f32.gmra.mxu0 %v74
    %v142 = vpop.f32.mrf.mxu0
    %v143 = vadd.f32 %v70, %v142
    %v144 = vpop.f32.mrf.mxu0
    %145 = vdwg.mxu0
    %v146 = vtanh.pop %v143
    %v147 = vld [vmem:[#allocation7] sm:$0xff]
    %v148 = vld [vmem:[#allocation7 + $0x8] sm:$0xff]
    %v149 = vld [vmem:[#allocation7 + $0x10] sm:$0xff]
    %v150 = vld [vmem:[#allocation7 + $0x18] sm:$0xff]
    %v151 = vld [vmem:[#allocation7 + $0x20] sm:$0xff]
    %v152 = vld [vmem:[#allocation7 + $0x28] sm:$0xff]
    %v153 = vld [vmem:[#allocation7 + $0x30] sm:$0xff]
    %v154 = vld [vmem:[#allocation7 + $0x38] sm:$0xff]
    %v155 = vld [vmem:[#allocation7 + $0x40] sm:$0xff]
    %v156 = vld [vmem:[#allocation7 + $0x48] sm:$0xff]
    %v157 = vld [vmem:[#allocation7 + $0x50] sm:$0xff]
    %v158 = vld [vmem:[#allocation7 + $0x58] sm:$0xff]
    %v159 = vld [vmem:[#allocation7 + $0x60] sm:$0xff]
    %v160 = vld [vmem:[#allocation7 + $0x68] sm:$0xff]
    %v161 = vld [vmem:[#allocation7 + $0x70] sm:$0xff]
    %v162 = vld [vmem:[#allocation7 + $0x78] sm:$0xff]
    %v163 = vld [vmem:[%s4] sm:$0x1]
    %v165 = vlaneseq
    %v166 = vshrl.u32 %v165, 7
    %v167 = vsub.s32 0, %v166
    %v168 = vrot.slane %v163, %v167
    %170 = vmatprep.subr.mxu0 0.0
    %171 = vmatpush1.msra.mxu0 %v162
    %172 = vmatprep.subr.mxu0 0.0
    %173 = vmatpush1.msra.mxu0 %v161
    %174 = vmatprep.subr.mxu0 0.0
    %175 = vmatpush1.msra.mxu0 %v160
    %176 = vmatprep.subr.mxu0 0.0
    %177 = vmatpush1.msra.mxu0 %v159
    %178 = vmatprep.subr.mxu0 0.0
    %179 = vmatpush1.msra.mxu0 %v158
    %180 = vmatprep.subr.mxu0 0.0
    %181 = vmatpush1.msra.mxu0 %v157
    %182 = vmatprep.subr.mxu0 0.0
    %183 = vmatpush1.msra.mxu0 %v156
    %184 = vmatprep.subr.mxu0 0.0
    %185 = vmatpush1.msra.mxu0 %v155
    %186 = vmatprep.subr.mxu0 0.0
    %187 = vmatpush1.msra.mxu0 %v154
    %188 = vmatprep.subr.mxu0 0.0
    %189 = vmatpush1.msra.mxu0 %v153
    %190 = vmatprep.subr.mxu0 0.0
    %191 = vmatpush1.msra.mxu0 %v152
    %192 = vmatprep.subr.mxu0 0.0
    %193 = vmatpush1.msra.mxu0 %v151
    %194 = vmatprep.subr.mxu0 0.0
    %195 = vmatpush1.msra.mxu0 %v150
    %196 = vmatprep.subr.mxu0 0.0
    %197 = vmatpush1.msra.mxu0 %v149
    %198 = vmatprep.subr.mxu0 0.0
    %199 = vmatpush1.msra.mxu0 %v148
    %200 = vmatprep.subr.mxu0 0.0
    %201 = vmatpush1.msra.mxu0 %v147
    %202 = vmatprep.subr.mxu0 0.0
    %203 = vmatpush2.msra.mxu0 0.0
    %204 = vmatprep.subr.mxu0 0.0
    %205 = vmatpush2.msra.mxu0 0.0
    %206 = vmatprep.subr.mxu0 0.0
    %207 = vmatpush2.msra.mxu0 0.0
    %208 = vmatprep.subr.mxu0 0.0
    %209 = vmatpush2.msra.mxu0 0.0
    %210 = vmatprep.subr.mxu0 0.0
    %211 = vmatpush2.msra.mxu0 0.0
    %212 = vmatprep.subr.mxu0 0.0
    %213 = vmatpush2.msra.mxu0 0.0
    %214 = vmatprep.subr.mxu0 0.0
    %215 = vmatpush2.msra.mxu0 0.0
    %216 = vmatprep.subr.mxu0 0.0
    %217 = vmatpush2.msra.mxu0 0.0
    %218 = vmatprep.subr.mxu0 0.0
    %219 = vmatpush2.msra.mxu0 0.0
    %220 = vmatprep.subr.mxu0 0.0
    %221 = vmatpush2.msra.mxu0 0.0
    %222 = vmatprep.subr.mxu0 0.0
    %223 = vmatpush2.msra.mxu0 0.0
    %224 = vmatprep.subr.mxu0 0.0
    %225 = vmatpush2.msra.mxu0 0.0
    %226 = vmatprep.subr.mxu0 0.0
    %227 = vmatpush2.msra.mxu0 0.0
    %228 = vmatprep.subr.mxu0 0.0
    %229 = vmatpush2.msra.mxu0 0.0
    %230 = vmatprep.subr.mxu0 0.0
    %231 = vmatpush2.msra.mxu0 0.0
    %232 = vmatprep.subr.mxu0 0.0
    %233 = vmatpush2.msra.mxu0 0.0
    %234 = vmatprep.mubr.f32.mxu0 0.0
    %235 = vmatmul.mubr.f32.gmra.mxu0 %v146
    %v236 = vpop.f32.mrf.mxu0
    %v237 = vadd.f32 %v168, %v236
    %v238 = vpop.f32.mrf.mxu0
    %239 = vdwg.mxu0
    %v240 = vlaneseq
    %v241 = vand.u32 %v240, 127
    %vm242 = vcmp.lt.s32.totalorder %v241, 16
    %v243 = vsel %vm242, %v237, -1e+30
    %244 = vmax.xlane.f32.xlu0 %v243
    %v245 = vpop.xlane.xlu0 %244
    %v246 = vsub.f32 %v243, %v245
    %v247 = vmul.f32 %v246, 1.442695
    %v248 = vpow.pop %v247
    %249 = vadd.xlane.f32.xlu0 %v248
    %v250 = vpop.xlane.xlu0 %249
    %v251 = vrcp.pop %v250
    %v252 = vmul.f32 %v248, %v251
    %v253 = vsel %vm242, %v252, %v237
    %254 = vst [vmem:[#allocation8] sm:$0xff] %v253
    // Predicated region
    $region34: #{tpu_custom_call.1} parent=1 // pred_check
      _
    $region35: #{tpu_custom_call.1} parent=1 // pred_check_branch
      %256 = sbr.rel (0) target = $region37
    $region36: #{tpu_custom_call.1} parent=1 // pred_region
      %s258 = ssub.s32 128, 128
      %259 = vsyncadd [#allocation4], %s258
      %s261 = sshll.u32 [#allocation8], 4
      %s262 = int_to_ptr.vmem [resolvable:$true] %s261
      %264 = dma.vmem_to_hbm [thread:$0]  %s262, 128, %s5, [#allocation4]
    $region37: #{tpu_custom_call.1} parent=1 // pred_fallthru
      _
    // Predicated region
    $region38: #{tpu_custom_call.1} parent=1 // pred_check
      _
    $region39: #{tpu_custom_call.1} parent=1 // pred_check_branch
      %266 = sbr.rel (0) target = $region41
    $region40: #{tpu_custom_call.1} parent=1 // pred_region
      %267 = dma.done [#allocation4], 128
    $region41: #{tpu_custom_call.1} parent=1 // pred_fallthru
      _
    %268 = vsyncpa [#allocation3], 1
    %269 = vsyncpa [#allocation6], 1
    %270 = vsyncpa [#allocation4], 1

</llo_original>
